<compile_context>
chip_gen: v5e
topology: v5e:2x2
jax: 0.10.0
libtpu: 0.0.40
codegen_flags: <defaults>
</compile_context>

<pallas_src>
import functools
import math

import jax
import jax.numpy as jnp
from jax.experimental import pallas as pl
from jax.experimental.pallas import tpu as pltpu


_TWO_PASS_BLOCK_BYTES = 2 * 1024 * 1024   # per-block target for the two-pass path
_LANE_TARGET = 512                        # >=512 lanes keeps DMAs near HBM roofline


def _round_up(n, m):
    return ((n + m - 1) // m) * m


def _round_down(n, m):
    return (n // m) * m


def _vmem_capacity_bytes():
    """Physical VMEM per core (128 MiB v5e/v6e, 64 MiB v7x); safe fallback."""
    try:
        return int(pltpu.get_tpu_info().vmem_capacity_bytes)
    except Exception:
        return 64 * 1024 * 1024


def _channel_conv(pooled, w_ref, *, K, P):
    """Zero-padded K-tap cross-correlation along the channel (lane) axis.

    conv[b, c] = sum_j w[j] * pooled[b, c + j - P]   (out-of-range taps -> 0)
    pooled: (Bt, C) f32 in registers; w_ref: (K,) f32 in SMEM.
    """
    Bt, C = pooled.shape
    c_idx = jax.lax.broadcasted_iota(jnp.int32, (Bt, C), 1)
    conv = w_ref[P] * pooled                       # center tap (K is odd)
    for j in range(K):
        off = j - P
        if off == 0:
            continue
        # result[c] = pooled[c + off]; edge taps masked to zero (zero padding).
        shifted = pltpu.roll(pooled, shift=(-off) % C, axis=1)
        valid = (c_idx + off >= 0) & (c_idx + off < C)
        conv = conv + w_ref[j] * jnp.where(valid, shifted, 0.0)
    return conv


# ---------------------------------------------------------------------------
# Fused single-pass kernel: pooling + conv + sigmoid + broadcast multiply.
# x is read from HBM once; used when a (C, L) slab fits the per-block budget.
# ---------------------------------------------------------------------------
def _eca_fused_kernel(w_ref, x_ref, o_ref, *, K, P, inv_l):
    x = x_ref[...]                                               # (bt, C, L)
    pooled = jnp.sum(x, axis=-1, dtype=jnp.float32) * inv_l      # (bt, C) f32
    attn = jax.nn.sigmoid(_channel_conv(pooled, w_ref, K=K, P=P))
    o_ref[...] = x * attn.astype(o_ref.dtype)[:, :, None]


def _eca_fused(x, conv_weight, *, slab_budget, vmem_cap):
    B, C, L = x.shape
    w = conv_weight.reshape(-1).astype(jnp.float32)
    K = int(w.shape[0])
    P = K // 2
    slab = C * L * x.dtype.itemsize

    # Pack batches per block up to the budget, but keep >= 2 (up to 4) grid
    # steps whenever B >= 2 so both v7x TensorCores and the DMA pipeline work.
    bt_budget = max(1, slab_budget // max(1, slab))
    desired_steps = max(1, min(B, 4))
    bt = max(1, min(bt_budget, pl.cdiv(B, desired_steps), B))
    grid_b = pl.cdiv(B, bt)                       # ragged last block is fine

    # 2x double-buffered input + 2x output blocks, plus compiler headroom.
    vmem_limit = int(min(vmem_cap * 3 // 4, 4 * bt * slab + (8 << 20)))

    return pl.pallas_call(
        functools.partial(_eca_fused_kernel, K=K, P=P, inv_l=1.0 / L),
        out_shape=jax.ShapeDtypeStruct((B, C, L), x.dtype),
        grid_spec=pltpu.PrefetchScalarGridSpec(
            num_scalar_prefetch=0,
            grid=(grid_b,),
            in_specs=[
                pl.BlockSpec(memory_space=pltpu.MemorySpace.SMEM),   # w: (K,)
                pl.BlockSpec((bt, C, L), lambda b: (b, 0, 0)),
            ],
            out_specs=pl.BlockSpec((bt, C, L), lambda b: (b, 0, 0)),
        ),
        compiler_params=pltpu.CompilerParams(
            dimension_semantics=("parallel",),
            vmem_limit_bytes=vmem_limit),
    )(w, x)


# ---------------------------------------------------------------------------
# Two-pass path for large C*L slabs (no XLA-level pad/slice of x).
# ---------------------------------------------------------------------------
def _two_pass_tiles(C, L, itemsize, block_bytes, lane_target):
    """Pick (ct, lt): lane-dense, ~block_bytes per x block, (8,128)-legal."""
    lane_target = max(128, _round_up(lane_target, 128))
    full_c_lanes = block_bytes // max(1, C * itemsize)
    if full_c_lanes >= lane_target:
        lt = _round_down(full_c_lanes, 128)        # full C, fat lane tile
    else:
        lt = lane_target                           # tile C, keep lanes wide
    lt = min(lt, _round_up(L, 128))
    if lt >= L:
        lt = L                                     # full dim (always legal)
    ct = _round_down(block_bytes // max(1, lt * itemsize), 128)
    ct = max(ct, 128)
    if ct >= C:
        ct = C                                     # full dim (always legal)
    return ct, lt


def _pool_sum_kernel(x_ref, o_ref, *, lt, true_l, mask_l):
    """Accumulate the pooled f32 sum over L tiles into the (1, ct, 1) output."""
    li = pl.program_id(2)

    @pl.when(li == 0)
    def _init():
        o_ref[...] = jnp.zeros_like(o_ref)

    x = x_ref[...].astype(jnp.float32)             # (1, ct, lt)
    if mask_l:
        # Mask the over-read tail of the ragged last L tile (Pallas does not
        # zero out-of-bounds input data).
        lane = jax.lax.broadcasted_iota(jnp.int32, x.shape, 2)
        x = jnp.where(li * lt + lane < true_l, x, 0.0)
    o_ref[...] += jnp.sum(x, axis=-1, keepdims=True)


def _scale_kernel(x_ref, attn_ref, o_ref):
    # attn block (1, ct, 1) f32 broadcasts along the lane (L) axis.
    o_ref[...] = x_ref[...] * attn_ref[...].astype(o_ref.dtype)


def _eca_two_pass(x, conv_weight, *, vmem_cap=None, block_bytes=None,
                  lane_target=None):
    B, C, L = x.shape
    itemsize = x.dtype.itemsize
    w = conv_weight.reshape(-1).astype(jnp.float32)
    K = int(w.shape[0])
    P = K // 2
    if vmem_cap is None:
        vmem_cap = _vmem_capacity_bytes()
    if block_bytes is None:
        block_bytes = _TWO_PASS_BLOCK_BYTES
    if lane_target is None:
        lane_target = _LANE_TARGET

    ct, lt = _two_pass_tiles(C, L, itemsize, block_bytes, lane_target)
    c_blocks = pl.cdiv(C, ct)
    l_blocks = pl.cdiv(L, lt)
    mask_l = (L % lt) != 0

    # 2x double-buffered x + 2x out blocks, small attn/pooled blocks + headroom.
    vmem_limit = int(min(vmem_cap * 3 // 4,
                         4 * ct * lt * itemsize + (8 << 20)))

    # Pass 1: pooled f32 sum over L (mask ragged tail; ragged C/B blocks only
    # produce rows that Pallas drops on writeback).
    pooled_sum = pl.pallas_call(
        functools.partial(_pool_sum_kernel, lt=lt, true_l=L, mask_l=mask_l),
        out_shape=jax.ShapeDtypeStruct((B, C, 1), jnp.float32),
        grid_spec=pltpu.PrefetchScalarGridSpec(
            num_scalar_prefetch=0,
            grid=(B, c_blocks, l_blocks),
            in_specs=[pl.BlockSpec((1, ct, lt), lambda b, c, l: (b, c, l))],
            out_specs=pl.BlockSpec((1, ct, 1), lambda b, c, l: (b, c, 0)),
        ),
        compiler_params=pltpu.CompilerParams(
            dimension_semantics=("parallel", "parallel", "arbitrary"),
            vmem_limit_bytes=vmem_limit),
    )(x)

    # Tiny XLA glue (B*C elements): mean -> K-tap zero-padded conv -> sigmoid.
    pooled = pooled_sum[:, :, 0] * (1.0 / L)                      # (B, C) f32
    padded = jnp.pad(pooled, ((0, 0), (P, P)))
    conv = sum(w[j] * padded[:, j:j + C] for j in range(K))
    attn = jax.nn.sigmoid(conv).astype(jnp.float32)[:, :, None]   # (B, C, 1)

    # Pass 2: streaming broadcast multiply over lane-dense (1, ct, lt) blocks.
    out = pl.pallas_call(
        _scale_kernel,
        out_shape=jax.ShapeDtypeStruct((B, C, L), x.dtype),
        grid_spec=pltpu.PrefetchScalarGridSpec(
            num_scalar_prefetch=0,
            grid=(B, c_blocks, l_blocks),
            in_specs=[
                pl.BlockSpec((1, ct, lt), lambda b, c, l: (b, c, l)),
                pl.BlockSpec((1, ct, 1), lambda b, c, l: (b, c, 0)),
            ],
            out_specs=pl.BlockSpec((1, ct, lt), lambda b, c, l: (b, c, l)),
        ),
        compiler_params=pltpu.CompilerParams(
            dimension_semantics=("parallel", "parallel", "parallel"),
            vmem_limit_bytes=vmem_limit),
    )(x, attn)
    return out


def eca_forward(x, conv_weight):
    """ECA forward. x: (B, C, L); conv_weight: Conv1d(1,1,K,bias=False) weight."""
    _, C, L = x.shape
    vmem_cap = _vmem_capacity_bytes()
    # Per-generation fused-path slab budget: ~16 MiB/block on 128-MiB VMEM
    # parts (v5e/v6e), ~8 MiB on v7x (64 MiB VMEM); 4x double-buffered blocks
    # stay well under the physical capacity with vmem_limit_bytes set.
    slab_budget = min(16 << 20, vmem_cap // 8)
    if C * L * x.dtype.itemsize <= slab_budget:
        return _eca_fused(x, conv_weight, slab_budget=slab_budget,
                          vmem_cap=vmem_cap)
    return _eca_two_pass(x, conv_weight, vmem_cap=vmem_cap)


if __name__ == "__main__":
    # Small shapes consistent with the module; C=32 gives kernel_size=3 (pad=1).
    B, C, L = 2, 32, 128
    gamma, b = 2, 1
    k = int(abs((math.log(C, 2) + b) / gamma))
    K = k if k % 2 else k + 1

    key = jax.random.PRNGKey(0)
    kx, kw, kx2, kx3 = jax.random.split(key, 4)
    x = jax.random.normal(kx, (B, C, L), dtype=jnp.float32)
    # Deterministic stand-in for nn.Conv1d weight of shape (1, 1, K).
    w = jax.random.normal(kw, (K,), dtype=jnp.float32) * 0.5

    def reference(xi, wi):
        Kk = int(wi.shape[0])
        Pp = Kk // 2
        _, Cc, _ = xi.shape
        pooled = xi.mean(axis=-1)                                 # (B, C)
        padded = jnp.pad(pooled, ((0, 0), (Pp, Pp)))              # zero-pad channels
        conv = sum(wi[j] * padded[:, j:j + Cc] for j in range(Kk))
        return jax.nn.sigmoid(conv)[:, :, None] * xi

    # Path 1: fused single-pass kernel (dispatcher picks it at this size).
    out = jax.block_until_ready(eca_forward(x, w))
    assert out.shape == x.shape and out.dtype == x.dtype
    assert jnp.allclose(out, reference(x, w), atol=1e-5, rtol=1e-5)

    # Path 1b: fused path with a ragged batch grid (B=7 -> bt=2, 4 grid steps,
    # last block out-of-bounds rows dropped by Pallas).
    x3 = jax.random.normal(kx3, (7, C, L), dtype=jnp.float32)
    out3 = jax.block_until_ready(eca_forward(x3, w))
    assert out3.shape == x3.shape
    assert jnp.allclose(out3, reference(x3, w), atol=1e-5, rtol=1e-5)

    # Path 2: two-pass kernels with forced-small tiles to exercise ragged C
    # and L blocks on the UNPADDED array (C=160 -> ct=128 + dropped tail,
    # L=200 -> lt=128 + masked tail) and the XLA conv/sigmoid glue.
    C2, L2 = 160, 200
    k2 = int(abs((math.log(C2, 2) + b) / gamma))
    K2 = k2 if k2 % 2 else k2 + 1
    w2 = jax.random.normal(kw, (K2,), dtype=jnp.float32) * 0.5
    x2 = jax.random.normal(kx2, (B, C2, L2), dtype=jnp.float32)
    out2 = jax.block_until_ready(
        _eca_two_pass(x2, w2, block_bytes=128 * 128 * 4, lane_target=128))
    assert out2.shape == x2.shape
    assert jnp.allclose(out2, reference(x2, w2), atol=1e-5, rtol=1e-5)

    print("KERNEL_OK")
</pallas_src>

<mosaic_0001>
module attributes {stable_mosaic.version = 11 : i64} {
  func.func @_eca_fused_kernel(%arg0: i32, %arg1: memref<3xf32, #tpu.memory_space<smem>>, %arg2: memref<1x32x128xf32, #tpu.memory_space<vmem>>, %arg3: memref<1x32x128xf32, #tpu.memory_space<vmem>>) attributes {dimension_semantics = [#tpu.dimension_semantics<parallel>], iteration_bounds = array<i64: 2>, scalar_prefetch = 0 : i64, scratch_operands = 0 : i64, tpu.core_type = #tpu.core_type<tc>, window_params = [{transform_indices = @transform_0, window_bounds = array<i64: 3>}, {transform_indices = @transform_1, window_bounds = array<i64: 1, 32, 128>}, {transform_indices = @transform_2, window_bounds = array<i64: 1, 32, 128>}]} {
    %c0 = arith.constant 0 : index
    %c0_0 = arith.constant 0 : index
    %c0_1 = arith.constant 0 : index
    %0 = vector.load %arg2[%c0, %c0_0, %c0_1] : memref<1x32x128xf32, #tpu.memory_space<vmem>>, vector<1x32x128xf32>
    %cst = arith.constant dense<0.000000e+00> : vector<1x32xf32>
    %1 = vector.multi_reduction <add>, %0, %cst [2] : vector<1x32x128xf32> to vector<1x32xf32>
    %cst_2 = arith.constant 7.812500e-03 : f32
    %2 = vector.broadcast %cst_2 : f32 to vector<1x32xf32>
    %3 = arith.mulf %1, %2 : vector<1x32xf32>
    %4 = tpu.iota {dimensions = array<i32: 1>} : vector<1x32xi32>
    %c1 = arith.constant 1 : index
    %5 = memref.load %arg1[%c1] : memref<3xf32, #tpu.memory_space<smem>>
    %6 = vector.broadcast %5 : f32 to vector<1x32xf32>
    %7 = arith.mulf %6, %3 : vector<1x32xf32>
    %c1_i32 = arith.constant 1 : i32
    %8 = tpu.dynamic_rotate %3 by %c1_i32 dim 1 : vector<1x32xf32>, i32 -> vector<1x32xf32>
    %c-1_i32 = arith.constant -1 : i32
    %9 = vector.broadcast %c-1_i32 : i32 to vector<1x32xi32>
    %10 = arith.addi %4, %9 : vector<1x32xi32>
    %c0_i32 = arith.constant 0 : i32
    %11 = vector.broadcast %c0_i32 : i32 to vector<1x32xi32>
    %12 = arith.cmpi sge, %10, %11 : vector<1x32xi32>
    %c-1_i32_3 = arith.constant -1 : i32
    %13 = vector.broadcast %c-1_i32_3 : i32 to vector<1x32xi32>
    %14 = arith.addi %4, %13 : vector<1x32xi32>
    %c32_i32 = arith.constant 32 : i32
    %15 = vector.broadcast %c32_i32 : i32 to vector<1x32xi32>
    %16 = arith.cmpi slt, %14, %15 : vector<1x32xi32>
    %17 = arith.andi %12, %16 : vector<1x32xi1>
    %c0_4 = arith.constant 0 : index
    %18 = memref.load %arg1[%c0_4] : memref<3xf32, #tpu.memory_space<smem>>
    %cst_5 = arith.constant 0.000000e+00 : f32
    %19 = vector.broadcast %cst_5 : f32 to vector<1x32xf32>
    %20 = arith.select %17, %8, %19 : vector<1x32xi1>, vector<1x32xf32>
    %21 = vector.broadcast %18 : f32 to vector<1x32xf32>
    %22 = arith.mulf %21, %20 : vector<1x32xf32>
    %23 = arith.addf %7, %22 : vector<1x32xf32>
    %c31_i32 = arith.constant 31 : i32
    %24 = tpu.dynamic_rotate %3 by %c31_i32 dim 1 : vector<1x32xf32>, i32 -> vector<1x32xf32>
    %c1_i32_6 = arith.constant 1 : i32
    %25 = vector.broadcast %c1_i32_6 : i32 to vector<1x32xi32>
    %26 = arith.addi %4, %25 : vector<1x32xi32>
    %c0_i32_7 = arith.constant 0 : i32
    %27 = vector.broadcast %c0_i32_7 : i32 to vector<1x32xi32>
    %28 = arith.cmpi sge, %26, %27 : vector<1x32xi32>
    %c1_i32_8 = arith.constant 1 : i32
    %29 = vector.broadcast %c1_i32_8 : i32 to vector<1x32xi32>
    %30 = arith.addi %4, %29 : vector<1x32xi32>
    %c32_i32_9 = arith.constant 32 : i32
    %31 = vector.broadcast %c32_i32_9 : i32 to vector<1x32xi32>
    %32 = arith.cmpi slt, %30, %31 : vector<1x32xi32>
    %33 = arith.andi %28, %32 : vector<1x32xi1>
    %c2 = arith.constant 2 : index
    %34 = memref.load %arg1[%c2] : memref<3xf32, #tpu.memory_space<smem>>
    %cst_10 = arith.constant 0.000000e+00 : f32
    %35 = vector.broadcast %cst_10 : f32 to vector<1x32xf32>
    %36 = arith.select %33, %24, %35 : vector<1x32xi1>, vector<1x32xf32>
    %37 = vector.broadcast %34 : f32 to vector<1x32xf32>
    %38 = arith.mulf %37, %36 : vector<1x32xf32>
    %39 = arith.addf %23, %38 : vector<1x32xf32>
    %40 = arith.negf %39 : vector<1x32xf32>
    %41 = math.exp %40 : vector<1x32xf32>
    %cst_11 = arith.constant 1.000000e+00 : f32
    %42 = vector.broadcast %cst_11 : f32 to vector<1x32xf32>
    %43 = arith.addf %42, %41 : vector<1x32xf32>
    %44 = arith.divf %42, %43 : vector<1x32xf32>
    %45 = vector.shape_cast %44 : vector<1x32xf32> to vector<1x32x1xf32>
    %46 = vector.broadcast %45 : vector<1x32x1xf32> to vector<1x32x128xf32>
    %47 = arith.mulf %0, %46 : vector<1x32x128xf32>
    %c0_12 = arith.constant 0 : index
    %c0_13 = arith.constant 0 : index
    %c0_14 = arith.constant 0 : index
    %48 = vector.load %arg3[%c0_12, %c0_13, %c0_14] : memref<1x32x128xf32, #tpu.memory_space<vmem>>, vector<1x32x128xf32>
    tpu.vector_store %arg3[%c0_12, %c0_13, %c0_14], %47 {strides = array<i32>} : memref<1x32x128xf32, #tpu.memory_space<vmem>>, vector<1x32x128xf32>,
    return
  }
  func.func @transform_0(%arg0: i32) -> i32 {
    %c0_i32 = arith.constant 0 : i32
    %c0_i32_0 = arith.constant 0 : i32
    return %c0_i32 : i32
  }
  func.func @transform_1(%arg0: i32) -> (i32, i32, i32) {
    %c0_i32 = arith.constant 0 : i32
    %c0_i32_0 = arith.constant 0 : i32
    %c0_i32_1 = arith.constant 0 : i32
    return %arg0, %c0_i32, %c0_i32_0 : i32, i32, i32
  }
  func.func @transform_2(%arg0: i32) -> (i32, i32, i32) {
    %c0_i32 = arith.constant 0 : i32
    %c0_i32_0 = arith.constant 0 : i32
    %c0_i32_1 = arith.constant 0 : i32
    return %arg0, %c0_i32, %c0_i32_0 : i32, i32, i32
  }
}

</mosaic_0001>

<llo_original>
// kernel: tpu_custom_call.1
$region0: #{tpu_custom_call.1}
  #allocation0 [shape = 'u32[]', space=smem, size = 0x4, offset = 0x4, fixed_abs, tag = 'smem constant byte address 0x4 - core index']
  #allocation1 [shape = 'u32[72,128]{1,0:T(1,128)}', space=vmem, size = 0x9000, scoped, tag = 'internal scratch']
  %s0 = inlined_call_operand.hbm [shape: f32[3], index: 0, kind: input, shape index: {}]
  %s1 = inlined_call_operand.hbm [shape: f32[2,32,128], index: 1, kind: input, shape index: {}]
  %s2 = inlined_call_operand.hbm [shape: f32[2,32,128], index: 2, kind: output, shape index: {}]
  %s3 = sld [smem:[#allocation0]]
  $region49: #{tpu_custom_call.1} parent=0
    _
  %s5 = ssub.s32 1, %s3
  %s6 = scalar_select 0, %s5, %s3
  $region1: #{tpu_custom_call.1} parent=0
    #allocation2 [shape = 'u8[512]{0}', space=smem, size = 0x200, scoped, tag = 'input window, operand 0, single buffered']
    #allocation3 [shape = 's32[2]{0}', space=sflag, size = 0x8, scoped, tag = 'scoped memory for tpu_custom_call.1']
    #allocation4 [shape = 's32[2]{0}', space=sflag, size = 0x8, scoped, tag = 'scoped memory for tpu_custom_call.1']
    #allocation5 [shape = 's32[2]{0}', space=sflag, size = 0x8, scoped, tag = 'scoped memory for tpu_custom_call.1']
    #allocation6 [shape = 'u8[32768]{0}', space=vmem, size = 0x8000, scoped, tag = 'input window, operand 1']
    #allocation7 [shape = 'u8[32768]{0}', space=vmem, size = 0x8000, scoped, tag = 'output window, operand 0']
    %7 = vsyncpa [#allocation5], 0
    %8 = vsyncpa [#allocation3], 0
    %s9 = scalar_lea.sflag [#allocation3], 1
    %10 = vsyncpa %s9, 0
    %11 = vsyncpa [#allocation4], 0
    %s12 = scalar_lea.sflag [#allocation4], 1
    %13 = vsyncpa %s12, 0
    loop: start=0, step=1, limit=4
    $region2: #{tpu_custom_call.1} parent=1 // loop_pre_header
      _
    $region3: #{tpu_custom_call.1} parent=1 // loop_header
      %s15 = sphi 0, %s19
      %p16 = scmp.ge.s32.totalorder %s15, 4
      %s23 = sphi 0, %s23
      %s25 = sphi 0, %s23
      %s26 = sphi 0, %s25
      %s40 = sphi 0, %s26
      %s46 = sphi 0, %s48
      %s49 = sphi 0, %s46
      %s50 = sphi 0, %s49
      %s66 = sphi 0, %s50
      %s72 = sphi 0, %s74
      %s75 = sphi 0, %s72
      %s76 = sphi 0, %s75
      %s92 = sphi 0, %s76
    $region4: #{tpu_custom_call.1} parent=1 // loop_header_branch
      %18 = sbr.rel (%p16) target = $region8
    $region5: #{tpu_custom_call.1} parent=1 // loop_body
      %s20 = ssub.s32 %s15, 1
      %s21 = ssub.s32 %s15, 2
      %s22 = sadd.s32 %s15, 1
      %s24 = sadd.s32 %s23, 1
      %p27 = scmp.eq.s32.totalorder %s15, 1
      %p28 = scmp.ne.s32.totalorder %s23, %s25
      %p29 = scmp.eq.s32.totalorder %s15, 0
      %p30 = por %p28, %p29
      %p31 = scmp.ne.s32.totalorder %s23, %s25
      %p32 = scmp.eq.s32.totalorder %s20, 1
      %p33 = por %p31, %p32
      %p34 = scmp.ne.s32.totalorder %s25, %s26
      %p35 = scmp.eq.s32.totalorder %s20, 0
      %p36 = por %p34, %p35
      %p37 = scmp.ne.s32.totalorder %s25, %s26
      %p38 = scmp.eq.s32.totalorder %s21, 1
      %p39 = por %p37, %p38
      %p41 = scmp.ne.s32.totalorder %s26, %s40
      %p42 = scmp.eq.s32.totalorder %s21, 0
      %p43 = por %p41, %p42
      %s44 = ssub.s32 %s15, %s22
      %p45 = scmp.eq.s32.totalorder %s44, 0
      %s47 = sadd.s32 %s46, 1
      %s48 = scalar_select %p45, %s46, %s47
      %p51 = pneg %p45
      %p52 = scmp.eq.s32.totalorder %s15, 1
      %p53 = por %p51, %p52
      %p54 = scmp.ne.s32.totalorder %s46, %s49
      %p55 = scmp.eq.s32.totalorder %s15, 0
      %p56 = por %p54, %p55
      %p57 = scmp.ne.s32.totalorder %s46, %s49
      %p58 = scmp.eq.s32.totalorder %s20, 1
      %p59 = por %p57, %p58
      %p60 = scmp.ne.s32.totalorder %s49, %s50
      %p61 = scmp.eq.s32.totalorder %s20, 0
      %p62 = por %p60, %p61
      %p63 = scmp.ne.s32.totalorder %s49, %s50
      %p64 = scmp.eq.s32.totalorder %s21, 1
      %p65 = por %p63, %p64
      %p67 = scmp.ne.s32.totalorder %s50, %s66
      %p68 = scmp.eq.s32.totalorder %s21, 0
      %p69 = por %p67, %p68
      %s70 = ssub.s32 %s15, %s22
      %p71 = scmp.eq.s32.totalorder %s70, 0
      %s73 = sadd.s32 %s72, 1
      %s74 = scalar_select %p71, %s72, %s73
      %p77 = pneg %p71
      %p78 = scmp.eq.s32.totalorder %s15, 1
      %p79 = por %p77, %p78
      %p80 = scmp.ne.s32.totalorder %s72, %s75
      %p81 = scmp.eq.s32.totalorder %s15, 0
      %p82 = por %p80, %p81
      %p83 = scmp.ne.s32.totalorder %s72, %s75
      %p84 = scmp.eq.s32.totalorder %s20, 1
      %p85 = por %p83, %p84
      %p86 = scmp.ne.s32.totalorder %s75, %s76
      %p87 = scmp.eq.s32.totalorder %s20, 0
      %p88 = por %p86, %p87
      %p89 = scmp.ne.s32.totalorder %s75, %s76
      %p90 = scmp.eq.s32.totalorder %s21, 1
      %p91 = por %p89, %p90
      %p93 = scmp.ne.s32.totalorder %s76, %s92
      %p94 = scmp.eq.s32.totalorder %s21, 0
      %p95 = por %p93, %p94
      %p96 = scmp.le.s32.totalorder 1, %s15
      %p97 = scmp.lt.s32.totalorder %s15, 3
      %p98 = pnand %p96, %p97
      %p99 = pneg %p98
      // Predicated region
      $region9: #{tpu_custom_call.1} parent=5 // pred_check
        _
      $region10: #{tpu_custom_call.1} parent=5 // pred_check_branch
        %101 = sbr.rel (%p98) target = $region12
      $region11: #{tpu_custom_call.1} parent=5 // pred_region
        %s102 = ssub.s32 %s15, 1
        // Predicated region
        $region13: #{tpu_custom_call.1} parent=11 // pred_check
          %p103 = pneg %p36
        $region14: #{tpu_custom_call.1} parent=11 // pred_check_branch
          %105 = sbr.rel (%p103) target = $region16
        $region15: #{tpu_custom_call.1} parent=11 // pred_region
          %107 = vsyncadd [#allocation5], 0
          %s109 = sshll.u32 %s0, 4
          %s110 = int_to_ptr.hbm [resolvable:$true] %s109
          %112 = dma.hbm_to_smem %s110, 16, [#allocation2], [#allocation5]
        $region16: #{tpu_custom_call.1} parent=11 // pred_fallthru
          _
      $region12: #{tpu_custom_call.1} parent=5 // pred_fallthru
        _
      %p113 = scmp.lt.s32.totalorder %s15, 2
      // Predicated region
      $region17: #{tpu_custom_call.1} parent=5 // pred_check
        %p114 = pneg %p113
      $region18: #{tpu_custom_call.1} parent=5 // pred_check_branch
        %116 = sbr.rel (%p114) target = $region20
      $region19: #{tpu_custom_call.1} parent=5 // pred_region
        // Predicated region
        $region21: #{tpu_custom_call.1} parent=19 // pred_check
          %p117 = pneg %p56
        $region22: #{tpu_custom_call.1} parent=19 // pred_check_branch
          %119 = sbr.rel (%p117) target = $region24
        $region23: #{tpu_custom_call.1} parent=19 // pred_region
          %s120 = sand.u32 %s46, 1
          %s121 = scalar_lea.sflag [#allocation3], %s120
          %s122 = sand.u32 %s46, 1
          %s123 = smul.addr %s122, 32
          %s124 = scalar_lea.vmem [#allocation6], %s123
          %126 = vsyncadd %s121, 0
          %s127 = smul.addr %s15, 4
          %s128 = smul.addr %s127, 8
          %s129 = scalar_lea.hbm %s1, %s128
          %s130 = sshll.u32 %s129, 4
          %s131 = int_to_ptr.hbm [resolvable:$true] %s130
          %s132 = sshll.u32 %s124, 4
          %s133 = int_to_ptr.vmem [resolvable:$true] %s132
          %138 = dma.hbm_to_vmem [thread:$0]  %s131, 512, %s133, %s121, 128, 128, 8
        $region24: #{tpu_custom_call.1} parent=19 // pred_fallthru
          _
      $region20: #{tpu_custom_call.1} parent=5 // pred_fallthru
        _
      %p139 = scmp.le.s32.totalorder 1, %s15
      %p140 = scmp.lt.s32.totalorder %s15, 3
      %p141 = pnand %p139, %p140
      %p142 = pneg %p141
      // Predicated region
      $region25: #{tpu_custom_call.1} parent=5 // pred_check
        _
      $region26: #{tpu_custom_call.1} parent=5 // pred_check_branch
        %144 = sbr.rel (%p141) target = $region28
      $region27: #{tpu_custom_call.1} parent=5 // pred_region
        %s145 = ssub.s32 %s15, 1
        // Predicated region
        $region29: #{tpu_custom_call.1} parent=27 // pred_check
          %p146 = pneg %p36
        $region30: #{tpu_custom_call.1} parent=27 // pred_check_branch
          %148 = sbr.rel (%p146) target = $region32
        $region31: #{tpu_custom_call.1} parent=27 // pred_region
          %150 = dma.done [#allocation5], 16
        $region32: #{tpu_custom_call.1} parent=27 // pred_fallthru
          _
        %s151 = sand.u32 %s49, 1
        %s152 = scalar_lea.sflag [#allocation3], %s151
        %s153 = sand.u32 %s49, 1
        %s154 = smul.addr %s153, 32
        %s155 = scalar_lea.vmem [#allocation6], %s154
        // Predicated region
        $region33: #{tpu_custom_call.1} parent=27 // pred_check
          %p156 = pneg %p62
        $region34: #{tpu_custom_call.1} parent=27 // pred_check_branch
          %158 = sbr.rel (%p156) target = $region36
        $region35: #{tpu_custom_call.1} parent=27 // pred_region
          %160 = dma.done %s152, 512
        $region36: #{tpu_custom_call.1} parent=27 // pred_fallthru
          _
        %161 = sfence
        %p162 = pneg %p36
        %p163 = pneg %p33
        %s164 = sand.u32 %s49, 1
        %s165 = scalar_lea.sflag [#allocation3], %s164
        %s166 = sand.u32 %s49, 1
        %s167 = smul.addr %s166, 32
        %s168 = scalar_lea.vmem [#allocation6], %s167
        %p169 = pneg %p62
        %p170 = pneg %p59
        %p171 = pneg %p88
        %p172 = pneg %p85
        %s173 = sand.u32 %s75, 1
        %s174 = scalar_lea.sflag [#allocation4], %s173
        %s175 = sand.u32 %s75, 1
        %s176 = smul.addr %s175, 32
        %s177 = scalar_lea.vmem [#allocation7], %s176
        %v178 = vld [vmem:[%s155] sm:$0xff]
        %v179 = vld [vmem:[%s155 + $0x8] sm:$0xff]
        %v180 = vld [vmem:[%s155 + $0x10] sm:$0xff]
        %v181 = vld [vmem:[%s155 + $0x18] sm:$0xff]
        %182 = vadd.xlane.f32.xlu0 %v178
        %v183 = vpop.xlane.xlu0 %182
        %184 = vadd.xlane.f32.xlu0 %v179
        %v185 = vpop.xlane.xlu0 %184
        %186 = vadd.xlane.f32.xlu0 %v180
        %v187 = vpop.xlane.xlu0 %186
        %188 = vadd.xlane.f32.xlu0 %v181
        %v189 = vpop.xlane.xlu0 %188
        %v190 = vmul.f32 %v183, 0.0078125
        %v191 = vmul.f32 %v185, 0.0078125
        %v192 = vmul.f32 %v187, 0.0078125
        %v193 = vmul.f32 %v189, 0.0078125
        %v194 = vlaneseq
        %v195 = vand.u32 %v194, 127
        %s196 = sld [smem:[#allocation2 + $0x1]]
        %v197 = vstv %s196
        %v198 = vmul.f32 %v197, %v190
        %v199 = vmul.f32 %v197, %v191
        %v200 = vmul.f32 %v197, %v192
        %v201 = vmul.f32 %v197, %v193
        %v206 = vperm.slane %v190, %v195
        %v207 = vadd.s32 %v195, 4294967288
        %v208 = vperm.slane %v191, %v207
        %vm209 = vcmask 130112
        %v210 = vsel %vm209, %v208, %v206
        %v211 = vadd.s32 %v195, 4294967280
        %v212 = vperm.slane %v192, %v211
        %vm213 = vcmask 195712
        %v214 = vsel %vm213, %v212, %v210
        %v215 = vadd.s32 %v195, 4294967272
        %v216 = vperm.slane %v193, %v215
        %vm217 = vcmask 261312
        %v218 = vsel %vm217, %v216, %v214
        %vm220 = vcmask 1047808
        %221 = vrot.lane.b32.xlu0 %v218, 32
        %v222 = vpop.permute.xlu0 %221
        %v223 = vsel %vm220, %v222, %v218
        %224 = vrot.lane.b32.xlu0 %v223, 32
        %v225 = vpop.permute.xlu0 %224
        %v226 = vsel %vm220, %v225, %v218
        %v227 = vadd.s32 %v195, 4294967295
        %vm228 = vcmp.ge.s32.totalorder %v227, 0
        %vm229 = vcmp.lt.s32.totalorder %v227, 32
        %vm230 = vmand %vm228, %vm229
        %s231 = sld [smem:[#allocation2]]
        %233 = vrot.lane.b32.xlu0 %v226, 97
        %v234 = vpop.permute.xlu0 %233
        %v236 = vsel %vm230, %v234, 0.0
        %v237 = vstv %s231
        %v238 = vmul.f32 %v237, %v236
        %v240 = vperm.slane %v238, 0
        %v241 = vlaneseq
        %v242 = vshrl.u32 %v241, 7
        %244 = vset.pattern.permute.xlu0 %v242
        %245 = vperm.xlu0 %244, %v240
        %v246 = vpop.permute.xlu0 %245
        %v247 = vlaneseq
        %v248 = vshrl.u32 %v247, 7
        %v249 = vadd.s32 %v248, 8
        %250 = vset.pattern.permute.xlu0 %v249
        %251 = vperm.xlu0 %250, %v240
        %v252 = vpop.permute.xlu0 %251
        %v253 = vlaneseq
        %v254 = vshrl.u32 %v253, 7
        %v255 = vadd.s32 %v254, 16
        %256 = vset.pattern.permute.xlu0 %v255
        %257 = vperm.xlu0 %256, %v240
        %v258 = vpop.permute.xlu0 %257
        %v259 = vlaneseq
        %v260 = vshrl.u32 %v259, 7
        %v261 = vadd.s32 %v260, 24
        %262 = vset.pattern.permute.xlu0 %v261
        %263 = vperm.xlu0 %262, %v240
        %v264 = vpop.permute.xlu0 %263
        %v269 = vadd.f32 %v198, %v246
        %v270 = vadd.f32 %v199, %v252
        %v271 = vadd.f32 %v200, %v258
        %v272 = vadd.f32 %v201, %v264
        %v273 = vadd.s32 %v195, 1
        %vm274 = vcmp.ge.s32.totalorder %v273, 0
        %vm275 = vcmp.lt.s32.totalorder %v273, 32
        %vm276 = vmand %vm274, %vm275
        %s277 = sld [smem:[#allocation2 + $0x2]]
        %278 = vrot.lane.b32.xlu0 %v226, 127
        %v279 = vpop.permute.xlu0 %278
        %v281 = vsel %vm276, %v279, 0.0
        %v282 = vstv %s277
        %v283 = vmul.f32 %v282, %v281
        %v285 = vperm.slane %v283, 0
        %v286 = vlaneseq
        %v287 = vshrl.u32 %v286, 7
        %289 = vset.pattern.permute.xlu0 %v287
        %290 = vperm.xlu0 %289, %v285
        %v291 = vpop.permute.xlu0 %290
        %v292 = vlaneseq
        %v293 = vshrl.u32 %v292, 7
        %v294 = vadd.s32 %v293, 8
        %295 = vset.pattern.permute.xlu0 %v294
        %296 = vperm.xlu0 %295, %v285
        %v297 = vpop.permute.xlu0 %296
        %v298 = vlaneseq
        %v299 = vshrl.u32 %v298, 7
        %v300 = vadd.s32 %v299, 16
        %301 = vset.pattern.permute.xlu0 %v300
        %302 = vperm.xlu0 %301, %v285
        %v303 = vpop.permute.xlu0 %302
        %v304 = vlaneseq
        %v305 = vshrl.u32 %v304, 7
        %v306 = vadd.s32 %v305, 24
        %307 = vset.pattern.permute.xlu0 %v306
        %308 = vperm.xlu0 %307, %v285
        %v309 = vpop.permute.xlu0 %308
        %v314 = vadd.f32 %v269, %v291
        %v315 = vadd.f32 %v270, %v297
        %v316 = vadd.f32 %v271, %v303
        %v317 = vadd.f32 %v272, %v309
        %v318 = vxor.u32 %v314, 2147483648
        %v319 = vxor.u32 %v315, 2147483648
        %v320 = vxor.u32 %v316, 2147483648
        %v321 = vxor.u32 %v317, 2147483648
        %v322 = vmul.f32 %v318, 1.442695
        %v323 = vpow.pop %v322
        %v324 = vmul.f32 %v319, 1.442695
        %v325 = vpow.pop %v324
        %v326 = vmul.f32 %v320, 1.442695
        %v327 = vpow.pop %v326
        %v328 = vmul.f32 %v321, 1.442695
        %v329 = vpow.pop %v328
        %v330 = vadd.f32 %v323, 1.0
        %v331 = vadd.f32 %v325, 1.0
        %v332 = vadd.f32 %v327, 1.0
        %v333 = vadd.f32 %v329, 1.0
        %v334 = vrcp.pop %v330
        %v335 = vmul.f32 %v330, %v334
        %v336 = vsub.f32 1.0, %v335
        %v337 = vmul.f32 %v334, %v336
        %v338 = vadd.f32 %v334, %v337
        %vm339 = vweird.f32 %v330
        %vm340 = vweird.f32 %v334
        %vm341 = vmor %vm339, %vm340
        %v342 = vsel %vm341, %v334, %v338
        %v343 = vand.u32 2147483647, %v330
        %vm344 = vcmp.eq.f32.partialorder %v343, 8.507059e+37
        %v345 = vand.u32 %v330, 2147483648
        %v346 = vor.u32 1.1754944e-38, %v345
        %v347 = vsel %vm344, %v346, %v342
        %v348 = vmul.f32 1.0, %v347
        %v349 = vrcp.pop %v331
        %v350 = vmul.f32 %v331, %v349
        %v351 = vsub.f32 1.0, %v350
        %v352 = vmul.f32 %v349, %v351
        %v353 = vadd.f32 %v349, %v352
        %vm354 = vweird.f32 %v331
        %vm355 = vweird.f32 %v349
        %vm356 = vmor %vm354, %vm355
        %v357 = vsel %vm356, %v349, %v353
        %v358 = vand.u32 2147483647, %v331
        %vm359 = vcmp.eq.f32.partialorder %v358, 8.507059e+37
        %v360 = vand.u32 %v331, 2147483648
        %v361 = vor.u32 1.1754944e-38, %v360
        %v362 = vsel %vm359, %v361, %v357
        %v363 = vmul.f32 1.0, %v362
        %v364 = vrcp.pop %v332
        %v365 = vmul.f32 %v332, %v364
        %v366 = vsub.f32 1.0, %v365
        %v367 = vmul.f32 %v364, %v366
        %v368 = vadd.f32 %v364, %v367
        %vm369 = vweird.f32 %v332
        %vm370 = vweird.f32 %v364
        %vm371 = vmor %vm369, %vm370
        %v372 = vsel %vm371, %v364, %v368
        %v373 = vand.u32 2147483647, %v332
        %vm374 = vcmp.eq.f32.partialorder %v373, 8.507059e+37
        %v375 = vand.u32 %v332, 2147483648
        %v376 = vor.u32 1.1754944e-38, %v375
        %v377 = vsel %vm374, %v376, %v372
        %v378 = vmul.f32 1.0, %v377
        %v379 = vrcp.pop %v333
        %v380 = vmul.f32 %v333, %v379
        %v381 = vsub.f32 1.0, %v380
        %v382 = vmul.f32 %v379, %v381
        %v383 = vadd.f32 %v379, %v382
        %vm384 = vweird.f32 %v333
        %vm385 = vweird.f32 %v379
        %vm386 = vmor %vm384, %vm385
        %v387 = vsel %vm386, %v379, %v383
        %v388 = vand.u32 2147483647, %v333
        %vm389 = vcmp.eq.f32.partialorder %v388, 8.507059e+37
        %v390 = vand.u32 %v333, 2147483648
        %v391 = vor.u32 1.1754944e-38, %v390
        %v392 = vsel %vm389, %v391, %v387
        %v393 = vmul.f32 1.0, %v392
        %395 = vset.pattern.permute.xlu0 0
        %396 = vperm.xlu0 %395, %v348
        %v397 = vpop.permute.xlu0 %396
        %400 = vset.pattern.permute.xlu0 0
        %401 = vperm.xlu0 %400, %v363
        %v402 = vpop.permute.xlu0 %401
        %405 = vset.pattern.permute.xlu0 0
        %406 = vperm.xlu0 %405, %v378
        %v407 = vpop.permute.xlu0 %406
        %410 = vset.pattern.permute.xlu0 0
        %411 = vperm.xlu0 %410, %v393
        %v412 = vpop.permute.xlu0 %411
        %v414 = vmul.f32 %v178, %v397
        %v415 = vmul.f32 %v179, %v402
        %v416 = vmul.f32 %v180, %v407
        %v417 = vmul.f32 %v181, %v412
        %418 = vst [vmem:[%s177] sm:$0xff] %v414
        %419 = vst [vmem:[%s177 + $0x8] sm:$0xff] %v415
        %420 = vst [vmem:[%s177 + $0x10] sm:$0xff] %v416
        %421 = vst [vmem:[%s177 + $0x18] sm:$0xff] %v417
        %s422 = sand.u32 %s75, 1
        %s423 = scalar_lea.sflag [#allocation4], %s422
        %s424 = sand.u32 %s75, 1
        %s425 = smul.addr %s424, 32
        %s426 = scalar_lea.vmem [#allocation7], %s425
        // Predicated region
        $region37: #{tpu_custom_call.1} parent=27 // pred_check
          %p427 = pneg %p85
        $region38: #{tpu_custom_call.1} parent=27 // pred_check_branch
          %429 = sbr.rel (%p427) target = $region40
        $region39: #{tpu_custom_call.1} parent=27 // pred_region
          %431 = vsyncadd %s423, 0
          %s432 = smul.addr %s20, 4
          %s433 = smul.addr %s432, 8
          %s434 = scalar_lea.hbm %s2, %s433
          %s435 = sshll.u32 %s426, 4
          %s436 = int_to_ptr.vmem [resolvable:$true] %s435
          %s437 = sshll.u32 %s434, 4
          %s438 = int_to_ptr.hbm [resolvable:$true] %s437
          %443 = dma.vmem_to_hbm [thread:$0]  %s436, 512, %s438, %s423, 128, 128, 8
        $region40: #{tpu_custom_call.1} parent=27 // pred_fallthru
          _
      $region28: #{tpu_custom_call.1} parent=5 // pred_fallthru
        _
      %p444 = scmp.le.s32.totalorder 2, %s15
      // Predicated region
      $region41: #{tpu_custom_call.1} parent=5 // pred_check
        %p445 = pneg %p444
      $region42: #{tpu_custom_call.1} parent=5 // pred_check_branch
        %447 = sbr.rel (%p445) target = $region44
      $region43: #{tpu_custom_call.1} parent=5 // pred_region
        %s448 = ssub.s32 %s15, 2
        // Predicated region
        $region45: #{tpu_custom_call.1} parent=43 // pred_check
          %p449 = pneg %p91
        $region46: #{tpu_custom_call.1} parent=43 // pred_check_branch
          %451 = sbr.rel (%p449) target = $region48
        $region47: #{tpu_custom_call.1} parent=43 // pred_region
          %s452 = sand.u32 %s76, 1
          %s453 = scalar_lea.sflag [#allocation4], %s452
          %s454 = sand.u32 %s76, 1
          %s455 = smul.addr %s454, 32
          %s456 = scalar_lea.vmem [#allocation7], %s455
          %458 = dma.done %s453, 512
        $region48: #{tpu_custom_call.1} parent=43 // pred_fallthru
          _
      $region44: #{tpu_custom_call.1} parent=5 // pred_fallthru
        _
    $region6: #{tpu_custom_call.1} parent=1 // loop_footer
      %s19 = sadd.s32 1, %s15
    $region7: #{tpu_custom_call.1} parent=1 // loop_footer_branch
      %14 = sbr.rel target = $region3
    $region8: #{tpu_custom_call.1} parent=1 // loop_exit
      _
    %459 = vsyncpa [#allocation3], 1
    %s460 = scalar_lea.sflag [#allocation3], 1
    %461 = vsyncpa %s460, 1
    %462 = vsyncpa [#allocation4], 1
    %s463 = scalar_lea.sflag [#allocation4], 1
    %464 = vsyncpa %s463, 1
    %465 = vsyncpa [#allocation5], 1
    %s466 = scalar_lea.sflag [#allocation5], 1
    %467 = vsyncpa %s466, 1

</llo_original>
